<compile_context>
chip_gen: v7x
topology: tpu7x:2x2x1
jax: 0.10.0
libtpu: 0.0.40
codegen_flags: <defaults>
</compile_context>

<pallas_src>
import functools
import math

import jax
import jax.numpy as jnp
from jax.experimental import pallas as pl
from jax.experimental.pallas import tpu as pltpu


NEG_MASK = -1e30  # softmax mask value for padded gate lanes


def _round_up(x, m):
    return ((x + m - 1) // m) * m


# ----------------------------- Pallas kernel ------------------------------ #
def policy_kernel(q_ref, obs_ref, w_ref, b_ref, out_ref, *, obs_dim):
    # obs_ref: (TB, obs_dim) row tile, NO lane padding (Mosaic pads K internally).
    # w_ref  : (3, D, D) packed weight slab [w1_t | w2_t | wg_t], zero-padded,
    #          dtype = compute dtype (f32 default, bf16 on v6e/v7x).
    # b_ref  : (3, 1, D) packed f32 bias slab; gate-bias pad lanes = NEG_MASK.
    # q_ref  : (1, 1) f32 scalar in SMEM (quantum expectation value).
    cdt = w_ref.dtype
    x = obs_ref[...]

    # MLP trunk: two Linear + ReLU (MXU matmuls, f32 accumulate, f32 bias/ReLU).
    h = jnp.dot(x, w_ref[0, :obs_dim, :],
                preferred_element_type=jnp.float32) + b_ref[0]
    h = jnp.maximum(h, 0.0)
    h = jnp.dot(h.astype(cdt), w_ref[1],
                preferred_element_type=jnp.float32) + b_ref[1]
    h = jnp.maximum(h, 0.0)

    # Gate head: Linear + softmax over the (padded, masked) 128-lane axis, all f32.
    logits = jnp.dot(h.astype(cdt), w_ref[2],
                     preferred_element_type=jnp.float32) + b_ref[2]
    m = jnp.max(logits, axis=-1, keepdims=True)
    e = jnp.exp(logits - m)
    s = jnp.sum(e, axis=-1, keepdims=True)
    r = pl.reciprocal(s, approx=True)        # EUP vrcp (free slot)
    r = r * (2.0 - s * r)                    # one Newton step -> ~full f32 precision
    r = r * q_ref[0, 0]                      # fold q_feat into per-row scale (cheap)
    out_ref[...] = e * r                     # lane-dense (row_tile, 128) store


# ------------------------------- wrapper ----------------------------------- #
def pack_params(params, obs_dim, hidden_dim, num_gates, compute_dtype=jnp.float32):
    """Pack the three Linear layers into lane-padded slabs (done once, off hot path).
    Weights are cast to `compute_dtype` offline (bf16 for v6e/v7x); biases stay f32."""
    D = 128 * max(1, -(-max(obs_dim, hidden_dim, num_gates) // 128))
    w_slab = jnp.zeros((3, D, D), jnp.float32)
    w_slab = w_slab.at[0, :obs_dim, :hidden_dim].set(params["w1_t"])
    w_slab = w_slab.at[1, :hidden_dim, :hidden_dim].set(params["w2_t"])
    w_slab = w_slab.at[2, :hidden_dim, :num_gates].set(params["wg_t"])
    w_slab = w_slab.astype(compute_dtype)

    b_slab = jnp.zeros((3, 1, D), jnp.float32)
    b_slab = b_slab.at[2, 0, :].set(NEG_MASK)          # mask padded gate lanes
    b_slab = b_slab.at[0, 0, :hidden_dim].set(params["b1"])
    b_slab = b_slab.at[1, 0, :hidden_dim].set(params["b2"])
    b_slab = b_slab.at[2, 0, :num_gates].set(params["bg"])
    return w_slab, b_slab


@functools.partial(jax.jit, static_argnames=("num_gates", "row_tile"))
def quantum_policy_forward(obs, w_slab, b_slab, q_feat, *, num_gates, row_tile=None):
    """obs: (B, obs_dim) f32. Returns (B, num_gates) f32 probabilities * q_feat."""
    B, obs_dim = obs.shape
    D = w_slab.shape[-1]
    compute_dtype = w_slab.dtype

    b8 = _round_up(B, 8)
    if row_tile is None:
        # f32 at 256 rows spills vregs / loads the vst slot; bf16 halves footprint.
        cap = 256 if compute_dtype == jnp.bfloat16 else 128
        if b8 >= 16:
            # Ensure >= 2 grid steps so ("parallel",) shards across both v7x TCs.
            row_tile = min(cap, _round_up((b8 + 1) // 2, 8))
        else:
            row_tile = b8
    b_pad = _round_up(b8, row_tile)

    # Batch-pad only (single jnp.pad); no lane padding of obs.
    obs_p = jnp.pad(obs, ((0, b_pad - B), (0, 0))).astype(compute_dtype)
    q2d = jnp.asarray(q_feat, jnp.float32).reshape(1, 1)

    kernel = functools.partial(policy_kernel, obs_dim=obs_dim)
    out = pl.pallas_call(
        kernel,
        out_shape=jax.ShapeDtypeStruct((b_pad, D), jnp.float32),
        grid=(b_pad // row_tile,),
        in_specs=[
            pl.BlockSpec(memory_space=pltpu.SMEM),               # q_feat scalar
            pl.BlockSpec((row_tile, obs_dim), lambda i: (i, 0)),  # unpadded obs tile
            pl.BlockSpec((3, D, D), lambda i: (0, 0, 0)),         # weights (resident)
            pl.BlockSpec((3, 1, D), lambda i: (0, 0, 0)),         # biases  (resident)
        ],
        out_specs=pl.BlockSpec((row_tile, D), lambda i: (i, 0)),  # lane-dense output
        compiler_params=pltpu.CompilerParams(
            dimension_semantics=("parallel",)),
    )(q2d, obs_p, w_slab, b_slab)
    return out[:B, :num_gates]


# --------------------- single-qubit statevector "glue" --------------------- #
# Computed ONCE outside the kernel / rollout loop (identity observable on a
# normalized statevector is mathematically 1.0).
def _ry(t):
    c, s = jnp.cos(t / 2), jnp.sin(t / 2)
    return jnp.array([[c, -s], [s, c]], dtype=jnp.complex64)


def _rx(t):
    c, s = jnp.cos(t / 2), jnp.sin(t / 2)
    return jnp.array([[c, -1j * s], [-1j * s, c]], dtype=jnp.complex64)


def _rz(t):
    return jnp.array([[jnp.exp(-1j * t / 2), 0.0],
                      [0.0, jnp.exp(1j * t / 2)]], dtype=jnp.complex64)


def quantum_expectation(param_values, obs_dim):
    """SimpleStatevectorEstimator.run with observables=[np.eye(2)], num_qubits=1,
    num_layers=1. q_params order = var_params + data_params; data RYs first, then
    the RX/RY/RZ variational layer."""
    var = param_values[:3]
    data = param_values[3:3 + obs_dim]
    psi = jnp.array([1.0 + 0.0j, 0.0 + 0.0j], dtype=jnp.complex64)
    for i in range(obs_dim):
        psi = _ry(data[i]) @ psi
    psi = _rx(var[0]) @ psi
    psi = _ry(var[1]) @ psi
    psi = _rz(var[2]) @ psi
    obs_mat = jnp.eye(2, dtype=jnp.complex64)
    exp_val = jnp.real(jnp.conj(psi) @ (obs_mat @ psi))  # == 1.0 (identity observable)
    return exp_val.astype(jnp.float32)


# ------------------------------- init / ref -------------------------------- #
def init_params(key, obs_dim, hidden_dim, num_gates):
    ks = jax.random.split(key, 7)

    def linear(kw, kb, fan_in, fan_out):
        bound = 1.0 / math.sqrt(fan_in)
        w = jax.random.uniform(kw, (fan_out, fan_in), jnp.float32, -bound, bound)
        b = jax.random.uniform(kb, (fan_out,), jnp.float32, -bound, bound)
        return w, b

    w1, b1 = linear(ks[0], ks[1], obs_dim, hidden_dim)
    w2, b2 = linear(ks[2], ks[3], hidden_dim, hidden_dim)
    wg, bg = linear(ks[4], ks[5], hidden_dim, num_gates)
    # param_values = nn.Parameter(torch.randn(3 + obs_dim))  (num_qubits=1, num_layers=1)
    q_param_values = jax.random.normal(ks[6], (3 + obs_dim,), jnp.float32)
    return {
        "w1_t": w1.T, "b1": b1,
        "w2_t": w2.T, "b2": b2,
        "wg_t": wg.T, "bg": bg,
        "q_param_values": q_param_values,
    }


def reference_forward(obs, params, q_feat):
    h1 = jnp.maximum(obs @ params["w1_t"] + params["b1"], 0.0)
    h2 = jnp.maximum(h1 @ params["w2_t"] + params["b2"], 0.0)
    logits = h2 @ params["wg_t"] + params["bg"]
    probs = jax.nn.softmax(logits, axis=-1)
    return probs * q_feat.reshape(())


# ---------------------------------- main ----------------------------------- #
if __name__ == "__main__":
    B, OBS_DIM, HIDDEN, NUM_GATES = 2, 16, 32, 8

    key = jax.random.PRNGKey(0)
    k_obs, k_params = jax.random.split(key)
    obs = jax.random.normal(k_obs, (B, OBS_DIM), jnp.float32)
    params = init_params(k_params, OBS_DIM, HIDDEN, NUM_GATES)

    # Quantum expectation: computed once (identity observable -> 1.0), off hot path.
    q_feat = quantum_expectation(params["q_param_values"], OBS_DIM)
    ref = reference_forward(obs, params, q_feat)

    # f32 operand path (default; v5e keeps this) — full 1e-5 precision check.
    w32, b32 = pack_params(params, OBS_DIM, HIDDEN, NUM_GATES,
                           compute_dtype=jnp.float32)
    out_f32 = jax.block_until_ready(
        quantum_policy_forward(obs, w32, b32, q_feat, num_gates=NUM_GATES))
    assert out_f32.shape == (B, NUM_GATES)
    assert jnp.allclose(out_f32, ref, atol=1e-5, rtol=1e-5), "f32 mismatch vs reference"

    # bf16 operand path (v6e/v7x MXU-native); f32 accumulate/bias/softmax, so
    # only the operand quantization shows up — relaxed tolerance.
    wbf, bbf = pack_params(params, OBS_DIM, HIDDEN, NUM_GATES,
                           compute_dtype=jnp.bfloat16)
    out_bf16 = jax.block_until_ready(
        quantum_policy_forward(obs, wbf, bbf, q_feat, num_gates=NUM_GATES))
    assert out_bf16.shape == (B, NUM_GATES)
    assert jnp.allclose(out_bf16, ref, atol=2e-2, rtol=2e-2), "bf16 mismatch vs reference"

    print("KERNEL_OK")
</pallas_src>

<mosaic_0001>
module attributes {stable_mosaic.version = 11 : i64} {
  func.func @policy_kernel(%arg0: i32, %arg1: memref<1x1xf32, #tpu.memory_space<smem>>, %arg2: memref<8x16xf32, #tpu.memory_space<vmem>>, %arg3: memref<3x128x128xf32, #tpu.memory_space<vmem>>, %arg4: memref<3x1x128xf32, #tpu.memory_space<vmem>>, %arg5: memref<8x128xf32, #tpu.memory_space<vmem>>) attributes {dimension_semantics = [#tpu.dimension_semantics<parallel>], iteration_bounds = array<i64: 1>, scalar_prefetch = 0 : i64, scratch_operands = 0 : i64, tpu.core_type = #tpu.core_type<tc>, window_params = [{transform_indices = @transform_0, window_bounds = array<i64: 1, 1>}, {transform_indices = @transform_1, window_bounds = array<i64: 8, 16>}, {pipeline_mode = #tpu.pipeline_mode<synchronous>, transform_indices = @transform_2, window_bounds = array<i64: 3, 128, 128>}, {pipeline_mode = #tpu.pipeline_mode<synchronous>, transform_indices = @transform_3, window_bounds = array<i64: 3, 1, 128>}, {transform_indices = @transform_4, window_bounds = array<i64: 8, 128>}]} {
    %c0 = arith.constant 0 : index
    %c0_0 = arith.constant 0 : index
    %0 = vector.load %arg2[%c0, %c0_0] : memref<8x16xf32, #tpu.memory_space<vmem>>, vector<8x16xf32>
    %c0_1 = arith.constant 0 : index
    %c0_2 = arith.constant 0 : index
    %c0_3 = arith.constant 0 : index
    %1 = vector.load %arg3[%c0_1, %c0_2, %c0_3] : memref<3x128x128xf32, #tpu.memory_space<vmem>>, vector<1x16x128xf32>
    %2 = vector.shape_cast %1 : vector<1x16x128xf32> to vector<16x128xf32>
    %cst = arith.constant dense<0.000000e+00> : vector<8x128xf32>
    %3 = tpu.matmul %0, %2, %cst {dimension_numbers = #tpu.dot_dimension_numbers<[1], [0], [0], [1], [0, 0, 1, 1], [], []>} : vector<8x16xf32>, vector<16x128xf32>, vector<8x128xf32> -> vector<8x128xf32>
    %c0_4 = arith.constant 0 : index
    %c0_5 = arith.constant 0 : index
    %c0_6 = arith.constant 0 : index
    %4 = vector.load %arg4[%c0_4, %c0_5, %c0_6] : memref<3x1x128xf32, #tpu.memory_space<vmem>>, vector<1x1x128xf32>
    %5 = vector.shape_cast %4 : vector<1x1x128xf32> to vector<1x128xf32>
    %6 = vector.broadcast %5 : vector<1x128xf32> to vector<8x128xf32>
    %7 = arith.addf %3, %6 : vector<8x128xf32>
    %cst_7 = arith.constant 0.000000e+00 : f32
    %8 = vector.broadcast %cst_7 : f32 to vector<8x128xf32>
    %9 = arith.maximumf %7, %8 : vector<8x128xf32>
    %c1 = arith.constant 1 : index
    %c0_8 = arith.constant 0 : index
    %c0_9 = arith.constant 0 : index
    %10 = vector.load %arg3[%c1, %c0_8, %c0_9] : memref<3x128x128xf32, #tpu.memory_space<vmem>>, vector<1x128x128xf32>
    %11 = vector.shape_cast %10 : vector<1x128x128xf32> to vector<128x128xf32>
    %cst_10 = arith.constant dense<0.000000e+00> : vector<8x128xf32>
    %12 = tpu.matmul %9, %11, %cst_10 {dimension_numbers = #tpu.dot_dimension_numbers<[1], [0], [0], [1], [0, 0, 1, 1], [], []>} : vector<8x128xf32>, vector<128x128xf32>, vector<8x128xf32> -> vector<8x128xf32>
    %c1_11 = arith.constant 1 : index
    %c0_12 = arith.constant 0 : index
    %c0_13 = arith.constant 0 : index
    %13 = vector.load %arg4[%c1_11, %c0_12, %c0_13] : memref<3x1x128xf32, #tpu.memory_space<vmem>>, vector<1x1x128xf32>
    %14 = vector.shape_cast %13 : vector<1x1x128xf32> to vector<1x128xf32>
    %15 = vector.broadcast %14 : vector<1x128xf32> to vector<8x128xf32>
    %16 = arith.addf %12, %15 : vector<8x128xf32>
    %cst_14 = arith.constant 0.000000e+00 : f32
    %17 = vector.broadcast %cst_14 : f32 to vector<8x128xf32>
    %18 = arith.maximumf %16, %17 : vector<8x128xf32>
    %c2 = arith.constant 2 : index
    %c0_15 = arith.constant 0 : index
    %c0_16 = arith.constant 0 : index
    %19 = vector.load %arg3[%c2, %c0_15, %c0_16] : memref<3x128x128xf32, #tpu.memory_space<vmem>>, vector<1x128x128xf32>
    %20 = vector.shape_cast %19 : vector<1x128x128xf32> to vector<128x128xf32>
    %cst_17 = arith.constant dense<0.000000e+00> : vector<8x128xf32>
    %21 = tpu.matmul %18, %20, %cst_17 {dimension_numbers = #tpu.dot_dimension_numbers<[1], [0], [0], [1], [0, 0, 1, 1], [], []>} : vector<8x128xf32>, vector<128x128xf32>, vector<8x128xf32> -> vector<8x128xf32>
    %c2_18 = arith.constant 2 : index
    %c0_19 = arith.constant 0 : index
    %c0_20 = arith.constant 0 : index
    %22 = vector.load %arg4[%c2_18, %c0_19, %c0_20] : memref<3x1x128xf32, #tpu.memory_space<vmem>>, vector<1x1x128xf32>
    %23 = vector.shape_cast %22 : vector<1x1x128xf32> to vector<1x128xf32>
    %24 = vector.broadcast %23 : vector<1x128xf32> to vector<8x128xf32>
    %25 = arith.addf %21, %24 : vector<8x128xf32>
    %cst_21 = arith.constant dense<0xFF800000> : vector<8xf32>
    %26 = vector.multi_reduction <maximumf>, %25, %cst_21 [1] : vector<8x128xf32> to vector<8xf32>
    %27 = vector.shape_cast %26 : vector<8xf32> to vector<8x1xf32>
    %28 = vector.broadcast %27 : vector<8x1xf32> to vector<8x128xf32>
    %29 = arith.subf %25, %28 : vector<8x128xf32>
    %30 = math.exp %29 : vector<8x128xf32>
    %cst_22 = arith.constant dense<0.000000e+00> : vector<8xf32>
    %31 = vector.multi_reduction <add>, %30, %cst_22 [1] : vector<8x128xf32> to vector<8xf32>
    %32 = vector.shape_cast %31 : vector<8xf32> to vector<8x1xf32>
    %33 = tpu.reciprocal %32 {approx = true} : vector<8x1xf32> -> vector<8x1xf32>
    %34 = arith.mulf %32, %33 : vector<8x1xf32>
    %cst_23 = arith.constant 2.000000e+00 : f32
    %35 = vector.broadcast %cst_23 : f32 to vector<8x1xf32>
    %36 = arith.subf %35, %34 : vector<8x1xf32>
    %37 = arith.mulf %33, %36 : vector<8x1xf32>
    %c0_24 = arith.constant 0 : index
    %c0_25 = arith.constant 0 : index
    %38 = memref.load %arg1[%c0_24, %c0_25] : memref<1x1xf32, #tpu.memory_space<smem>>
    %39 = vector.broadcast %38 : f32 to vector<8x1xf32>
    %40 = arith.mulf %37, %39 : vector<8x1xf32>
    %41 = vector.broadcast %40 : vector<8x1xf32> to vector<8x128xf32>
    %42 = arith.mulf %30, %41 : vector<8x128xf32>
    %c0_26 = arith.constant 0 : index
    %c0_27 = arith.constant 0 : index
    %43 = vector.load %arg5[%c0_26, %c0_27] : memref<8x128xf32, #tpu.memory_space<vmem>>, vector<8x128xf32>
    tpu.vector_store %arg5[%c0_26, %c0_27], %42 {strides = array<i32>} : memref<8x128xf32, #tpu.memory_space<vmem>>, vector<8x128xf32>,
    return
  }
  func.func @transform_0(%arg0: i32) -> (i32, i32) {
    %c0_i32 = arith.constant 0 : i32
    %c0_i32_0 = arith.constant 0 : i32
    %c0_i32_1 = arith.constant 0 : i32
    return %c0_i32, %c0_i32_0 : i32, i32
  }
  func.func @transform_1(%arg0: i32) -> (i32, i32) {
    %c0_i32 = arith.constant 0 : i32
    %c0_i32_0 = arith.constant 0 : i32
    return %arg0, %c0_i32 : i32, i32
  }
  func.func @transform_2(%arg0: i32) -> (i32, i32, i32) {
    %c0_i32 = arith.constant 0 : i32
    %c0_i32_0 = arith.constant 0 : i32
    %c0_i32_1 = arith.constant 0 : i32
    %c0_i32_2 = arith.constant 0 : i32
    return %c0_i32, %c0_i32_0, %c0_i32_1 : i32, i32, i32
  }
  func.func @transform_3(%arg0: i32) -> (i32, i32, i32) {
    %c0_i32 = arith.constant 0 : i32
    %c0_i32_0 = arith.constant 0 : i32
    %c0_i32_1 = arith.constant 0 : i32
    %c0_i32_2 = arith.constant 0 : i32
    return %c0_i32, %c0_i32_0, %c0_i32_1 : i32, i32, i32
  }
  func.func @transform_4(%arg0: i32) -> (i32, i32) {
    %c0_i32 = arith.constant 0 : i32
    %c0_i32_0 = arith.constant 0 : i32
    return %arg0, %c0_i32 : i32, i32
  }
}

</mosaic_0001>

<llo_original>
// kernel: quantum_policy_forward.1
$region0: #{quantum_policy_forward.1}
  #allocation0 [shape = 'u32[]', space=smem, size = 0x4, offset = 0x4, fixed_abs, tag = 'smem constant byte address 0x4 - core index']
  #allocation1 [shape = 'u32[144,128]{1,0:T(1,128)}', space=vmem, size = 0x12000, scoped, tag = 'internal scratch']
  #allocation2 [shape = 'f32[1,1]{1,0:T(1,128)S(6)}', space=smem, size = 0x200, scoped, tag = 'scoped memory for quantum_policy_forward.1']
  %s0 = inlined_call_operand.<no memory space> [shape: f32[1,1], index: 0, kind: input, shape index: {}]
  %s1 = inlined_call_operand.vmem [shape: f32[8,16], index: 1, kind: input, shape index: {}]
  %s2 = inlined_call_operand.hbm [shape: f32[3,128,128], index: 2, kind: input, shape index: {}]
  %s3 = inlined_call_operand.vmem [shape: f32[3,1,128], index: 3, kind: input, shape index: {}]
  %s4 = inlined_call_operand.vmem [shape: f32[8,128], index: 4, kind: output, shape index: {}]
  %s5 = sld [smem:[#allocation0]]
  $region30: #{quantum_policy_forward.1} parent=0
    _
  %s7 = ssub.s32 1, %s5
  %s8 = scalar_select 0, %s7, %s5
  %9 = sst [smem:[#allocation2]] %s0
  $region1: #{quantum_policy_forward.1} parent=0
    #allocation3 [shape = 'u8[196608]{0}', space=vmem, size = 0x30000, scoped, tag = 'input window, operand 2, single buffered']
    #allocation4 [shape = 's32[1]{0}', space=sflag, size = 0x4, scoped, tag = 'scoped memory for quantum_policy_forward.1']
    %10 = vsyncpa [#allocation4], 0
    // Predicated region
    $region2: #{quantum_policy_forward.1} parent=1 // pred_check
      _
    $region3: #{quantum_policy_forward.1} parent=1 // pred_check_branch
      %12 = sbr.rel (0) target = $region5
    $region4: #{quantum_policy_forward.1} parent=1 // pred_region
      _
    $region5: #{quantum_policy_forward.1} parent=1 // pred_fallthru
      _
    // Predicated region
    $region6: #{quantum_policy_forward.1} parent=1 // pred_check
      _
    $region7: #{quantum_policy_forward.1} parent=1 // pred_check_branch
      %14 = sbr.rel (0) target = $region9
    $region8: #{quantum_policy_forward.1} parent=1 // pred_region
      _
    $region9: #{quantum_policy_forward.1} parent=1 // pred_fallthru
      _
    // Predicated region
    $region10: #{quantum_policy_forward.1} parent=1 // pred_check
      _
    $region11: #{quantum_policy_forward.1} parent=1 // pred_check_branch
      %16 = sbr.rel (0) target = $region13
    $region12: #{quantum_policy_forward.1} parent=1 // pred_region
      %s18 = ssub.s32 6144, 6144
      %19 = vsyncadd [#allocation4], %s18
      %s20 = sshll.u32 [#allocation3], 4
      %s21 = int_to_ptr.vmem [resolvable:$true] %s20
      %26 = dma.hbm_to_vmem [thread:$0]  %s2, 6144, %s21, [#allocation4], 128, 128, 8
    $region13: #{quantum_policy_forward.1} parent=1 // pred_fallthru
      _
    // Predicated region
    $region14: #{quantum_policy_forward.1} parent=1 // pred_check
      _
    $region15: #{quantum_policy_forward.1} parent=1 // pred_check_branch
      %28 = sbr.rel (0) target = $region17
    $region16: #{quantum_policy_forward.1} parent=1 // pred_region
      _
    $region17: #{quantum_policy_forward.1} parent=1 // pred_fallthru
      _
    // Predicated region
    $region18: #{quantum_policy_forward.1} parent=1 // pred_check
      _
    $region19: #{quantum_policy_forward.1} parent=1 // pred_check_branch
      %30 = sbr.rel (0) target = $region21
    $region20: #{quantum_policy_forward.1} parent=1 // pred_region
      %31 = dma.done [#allocation4], 6144
    $region21: #{quantum_policy_forward.1} parent=1 // pred_fallthru
      _
    %v32 = vld [vmem:[%s1] sm:$0xff]
    %v33 = vld [vmem:[#allocation3] sm:$0xff]
    %v34 = vld [vmem:[#allocation3 + $0x8] sm:$0xff]
    %v35 = vld [vmem:[%s3] sm:$0x1]
    %v37 = vlaneseq
    %v38 = vshrl.u32 %v37, 7
    %v39 = vsub.s32 0, %v38
    %v40 = vrot.slane %v35, %v39
    %vm42 = vcmask 130048
    %v44 = vsel %vm42, %v32, 0
    %46 = vmatprep.subr.mxu0 0.0
    %47 = vmatpush1.msra.mxu0 %v33
    %48 = vmatprep.subr.mxu0 0.0
    %49 = vmatpush1.msra.mxu0 %v34
    %50 = vmatprep.subr.mxu0 0.0
    %51 = vmatpush1.msra.mxu0 0.0
    %52 = vmatprep.subr.mxu0 0.0
    %53 = vmatpush1.msra.mxu0 0.0
    %54 = vmatprep.subr.mxu0 0.0
    %55 = vmatpush1.msra.mxu0 0.0
    %56 = vmatprep.subr.mxu0 0.0
    %57 = vmatpush1.msra.mxu0 0.0
    %58 = vmatprep.subr.mxu0 0.0
    %59 = vmatpush1.msra.mxu0 0.0
    %60 = vmatprep.subr.mxu0 0.0
    %61 = vmatpush1.msra.mxu0 0.0
    %62 = vmatprep.subr.mxu0 0.0
    %63 = vmatpush1.msra.mxu0 0.0
    %64 = vmatprep.subr.mxu0 0.0
    %65 = vmatpush1.msra.mxu0 0.0
    %66 = vmatprep.subr.mxu0 0.0
    %67 = vmatpush1.msra.mxu0 0.0
    %68 = vmatprep.subr.mxu0 0.0
    %69 = vmatpush1.msra.mxu0 0.0
    %70 = vmatprep.subr.mxu0 0.0
    %71 = vmatpush1.msra.mxu0 0.0
    %72 = vmatprep.subr.mxu0 0.0
    %73 = vmatpush1.msra.mxu0 0.0
    %74 = vmatprep.subr.mxu0 0.0
    %75 = vmatpush1.msra.mxu0 0.0
    %76 = vmatprep.subr.mxu0 0.0
    %77 = vmatpush1.msra.mxu0 0.0
    %78 = vmatprep.subr.mxu0 0.0
    %79 = vmatpush1.msra.mxu0 0.0
    %80 = vmatprep.subr.mxu0 0.0
    %81 = vmatpush1.msra.mxu0 0.0
    %82 = vmatprep.subr.mxu0 0.0
    %83 = vmatpush1.msra.mxu0 0.0
    %84 = vmatprep.subr.mxu0 0.0
    %85 = vmatpush1.msra.mxu0 0.0
    %86 = vmatprep.subr.mxu0 0.0
    %87 = vmatpush1.msra.mxu0 0.0
    %88 = vmatprep.subr.mxu0 0.0
    %89 = vmatpush1.msra.mxu0 0.0
    %90 = vmatprep.subr.mxu0 0.0
    %91 = vmatpush1.msra.mxu0 0.0
    %92 = vmatprep.subr.mxu0 0.0
    %93 = vmatpush1.msra.mxu0 0.0
    %94 = vmatprep.subr.mxu0 0.0
    %95 = vmatpush1.msra.mxu0 0.0
    %96 = vmatprep.subr.mxu0 0.0
    %97 = vmatpush1.msra.mxu0 0.0
    %98 = vmatprep.subr.mxu0 0.0
    %99 = vmatpush1.msra.mxu0 0.0
    %100 = vmatprep.subr.mxu0 0.0
    %101 = vmatpush1.msra.mxu0 0.0
    %102 = vmatprep.subr.mxu0 0.0
    %103 = vmatpush1.msra.mxu0 0.0
    %104 = vmatprep.subr.mxu0 0.0
    %105 = vmatpush1.msra.mxu0 0.0
    %106 = vmatprep.subr.mxu0 0.0
    %107 = vmatpush1.msra.mxu0 0.0
    %108 = vmatprep.subr.mxu0 0.0
    %109 = vmatpush1.msra.mxu0 0.0
    %110 = vmatprep.mubr.f32.mxu0 0.0
    %111 = vmatmul.mubr.f32.gmra.mrb[0].mxu0 %v44
    %v112 = vpop.f32.mrb[0].mxu0
    %v113 = vadd.f32 %v40, %v112
    %v114 = vpop.f32.mrb[0].mxu0
    %115 = vdwg.mxu0
    %v116 = vmax.f32 %v113, 0.0
    %s117 = scalar_lea.vmem [#allocation3], 128
    %v118 = vld [vmem:[%s117] sm:$0xff]
    %v119 = vld [vmem:[%s117 + $0x8] sm:$0xff]
    %v120 = vld [vmem:[%s117 + $0x10] sm:$0xff]
    %v121 = vld [vmem:[%s117 + $0x18] sm:$0xff]
    %v122 = vld [vmem:[%s117 + $0x20] sm:$0xff]
    %v123 = vld [vmem:[%s117 + $0x28] sm:$0xff]
    %v124 = vld [vmem:[%s117 + $0x30] sm:$0xff]
    %v125 = vld [vmem:[%s117 + $0x38] sm:$0xff]
    %v126 = vld [vmem:[%s117 + $0x40] sm:$0xff]
    %v127 = vld [vmem:[%s117 + $0x48] sm:$0xff]
    %v128 = vld [vmem:[%s117 + $0x50] sm:$0xff]
    %v129 = vld [vmem:[%s117 + $0x58] sm:$0xff]
    %v130 = vld [vmem:[%s117 + $0x60] sm:$0xff]
    %v131 = vld [vmem:[%s117 + $0x68] sm:$0xff]
    %v132 = vld [vmem:[%s117 + $0x70] sm:$0xff]
    %v133 = vld [vmem:[%s117 + $0x78] sm:$0xff]
    %s134 = scalar_lea.vmem %s3, 1
    %v135 = vld [vmem:[%s134] sm:$0x1]
    %v137 = vlaneseq
    %v138 = vshrl.u32 %v137, 7
    %v139 = vsub.s32 0, %v138
    %v140 = vrot.slane %v135, %v139
    %142 = vmatprep.subr.mxu0 0.0
    %143 = vmatpush1.msra.mxu0 %v118
    %144 = vmatprep.subr.mxu0 0.0
    %145 = vmatpush1.msra.mxu0 %v119
    %146 = vmatprep.subr.mxu0 0.0
    %147 = vmatpush1.msra.mxu0 %v120
    %148 = vmatprep.subr.mxu0 0.0
    %149 = vmatpush1.msra.mxu0 %v121
    %150 = vmatprep.subr.mxu0 0.0
    %151 = vmatpush1.msra.mxu0 %v122
    %152 = vmatprep.subr.mxu0 0.0
    %153 = vmatpush1.msra.mxu0 %v123
    %154 = vmatprep.subr.mxu0 0.0
    %155 = vmatpush1.msra.mxu0 %v124
    %156 = vmatprep.subr.mxu0 0.0
    %157 = vmatpush1.msra.mxu0 %v125
    %158 = vmatprep.subr.mxu0 0.0
    %159 = vmatpush1.msra.mxu0 %v126
    %160 = vmatprep.subr.mxu0 0.0
    %161 = vmatpush1.msra.mxu0 %v127
    %162 = vmatprep.subr.mxu0 0.0
    %163 = vmatpush1.msra.mxu0 %v128
    %164 = vmatprep.subr.mxu0 0.0
    %165 = vmatpush1.msra.mxu0 %v129
    %166 = vmatprep.subr.mxu0 0.0
    %167 = vmatpush1.msra.mxu0 %v130
    %168 = vmatprep.subr.mxu0 0.0
    %169 = vmatpush1.msra.mxu0 %v131
    %170 = vmatprep.subr.mxu0 0.0
    %171 = vmatpush1.msra.mxu0 %v132
    %172 = vmatprep.subr.mxu0 0.0
    %173 = vmatpush1.msra.mxu0 %v133
    %174 = vmatprep.subr.mxu0 0.0
    %175 = vmatpush1.msra.mxu0 0.0
    %176 = vmatprep.subr.mxu0 0.0
    %177 = vmatpush1.msra.mxu0 0.0
    %178 = vmatprep.subr.mxu0 0.0
    %179 = vmatpush1.msra.mxu0 0.0
    %180 = vmatprep.subr.mxu0 0.0
    %181 = vmatpush1.msra.mxu0 0.0
    %182 = vmatprep.subr.mxu0 0.0
    %183 = vmatpush1.msra.mxu0 0.0
    %184 = vmatprep.subr.mxu0 0.0
    %185 = vmatpush1.msra.mxu0 0.0
    %186 = vmatprep.subr.mxu0 0.0
    %187 = vmatpush1.msra.mxu0 0.0
    %188 = vmatprep.subr.mxu0 0.0
    %189 = vmatpush1.msra.mxu0 0.0
    %190 = vmatprep.subr.mxu0 0.0
    %191 = vmatpush1.msra.mxu0 0.0
    %192 = vmatprep.subr.mxu0 0.0
    %193 = vmatpush1.msra.mxu0 0.0
    %194 = vmatprep.subr.mxu0 0.0
    %195 = vmatpush1.msra.mxu0 0.0
    %196 = vmatprep.subr.mxu0 0.0
    %197 = vmatpush1.msra.mxu0 0.0
    %198 = vmatprep.subr.mxu0 0.0
    %199 = vmatpush1.msra.mxu0 0.0
    %200 = vmatprep.subr.mxu0 0.0
    %201 = vmatpush1.msra.mxu0 0.0
    %202 = vmatprep.subr.mxu0 0.0
    %203 = vmatpush1.msra.mxu0 0.0
    %204 = vmatprep.subr.mxu0 0.0
    %205 = vmatpush1.msra.mxu0 0.0
    %206 = vmatprep.mubr.f32.mxu0 0.0
    %207 = vmatmul.mubr.f32.gmra.mrb[0].mxu0 %v116
    %v208 = vpop.f32.mrb[0].mxu0
    %v209 = vadd.f32 %v140, %v208
    %v210 = vpop.f32.mrb[0].mxu0
    %211 = vdwg.mxu0
    %v212 = vmax.f32 %v209, 0.0
    %s213 = scalar_lea.vmem [#allocation3], 256
    %v214 = vld [vmem:[%s213] sm:$0xff]
    %v215 = vld [vmem:[%s213 + $0x8] sm:$0xff]
    %v216 = vld [vmem:[%s213 + $0x10] sm:$0xff]
    %v217 = vld [vmem:[%s213 + $0x18] sm:$0xff]
    %v218 = vld [vmem:[%s213 + $0x20] sm:$0xff]
    %v219 = vld [vmem:[%s213 + $0x28] sm:$0xff]
    %v220 = vld [vmem:[%s213 + $0x30] sm:$0xff]
    %v221 = vld [vmem:[%s213 + $0x38] sm:$0xff]
    %v222 = vld [vmem:[%s213 + $0x40] sm:$0xff]
    %v223 = vld [vmem:[%s213 + $0x48] sm:$0xff]
    %v224 = vld [vmem:[%s213 + $0x50] sm:$0xff]
    %v225 = vld [vmem:[%s213 + $0x58] sm:$0xff]
    %v226 = vld [vmem:[%s213 + $0x60] sm:$0xff]
    %v227 = vld [vmem:[%s213 + $0x68] sm:$0xff]
    %v228 = vld [vmem:[%s213 + $0x70] sm:$0xff]
    %v229 = vld [vmem:[%s213 + $0x78] sm:$0xff]
    %s230 = scalar_lea.vmem %s3, 2
    %v231 = vld [vmem:[%s230] sm:$0x1]
    %v233 = vlaneseq
    %v234 = vshrl.u32 %v233, 7
    %v235 = vsub.s32 0, %v234
    %v236 = vrot.slane %v231, %v235
    %238 = vmatprep.subr.mxu0 0.0
    %239 = vmatpush1.msra.mxu0 %v214
    %240 = vmatprep.subr.mxu0 0.0
    %241 = vmatpush1.msra.mxu0 %v215
    %242 = vmatprep.subr.mxu0 0.0
    %243 = vmatpush1.msra.mxu0 %v216
    %244 = vmatprep.subr.mxu0 0.0
    %245 = vmatpush1.msra.mxu0 %v217
    %246 = vmatprep.subr.mxu0 0.0
    %247 = vmatpush1.msra.mxu0 %v218
    %248 = vmatprep.subr.mxu0 0.0
    %249 = vmatpush1.msra.mxu0 %v219
    %250 = vmatprep.subr.mxu0 0.0
    %251 = vmatpush1.msra.mxu0 %v220
    %252 = vmatprep.subr.mxu0 0.0
    %253 = vmatpush1.msra.mxu0 %v221
    %254 = vmatprep.subr.mxu0 0.0
    %255 = vmatpush1.msra.mxu0 %v222
    %256 = vmatprep.subr.mxu0 0.0
    %257 = vmatpush1.msra.mxu0 %v223
    %258 = vmatprep.subr.mxu0 0.0
    %259 = vmatpush1.msra.mxu0 %v224
    %260 = vmatprep.subr.mxu0 0.0
    %261 = vmatpush1.msra.mxu0 %v225
    %262 = vmatprep.subr.mxu0 0.0
    %263 = vmatpush1.msra.mxu0 %v226
    %264 = vmatprep.subr.mxu0 0.0
    %265 = vmatpush1.msra.mxu0 %v227
    %266 = vmatprep.subr.mxu0 0.0
    %267 = vmatpush1.msra.mxu0 %v228
    %268 = vmatprep.subr.mxu0 0.0
    %269 = vmatpush1.msra.mxu0 %v229
    %270 = vmatprep.subr.mxu0 0.0
    %271 = vmatpush1.msra.mxu0 0.0
    %272 = vmatprep.subr.mxu0 0.0
    %273 = vmatpush1.msra.mxu0 0.0
    %274 = vmatprep.subr.mxu0 0.0
    %275 = vmatpush1.msra.mxu0 0.0
    %276 = vmatprep.subr.mxu0 0.0
    %277 = vmatpush1.msra.mxu0 0.0
    %278 = vmatprep.subr.mxu0 0.0
    %279 = vmatpush1.msra.mxu0 0.0
    %280 = vmatprep.subr.mxu0 0.0
    %281 = vmatpush1.msra.mxu0 0.0
    %282 = vmatprep.subr.mxu0 0.0
    %283 = vmatpush1.msra.mxu0 0.0
    %284 = vmatprep.subr.mxu0 0.0
    %285 = vmatpush1.msra.mxu0 0.0
    %286 = vmatprep.subr.mxu0 0.0
    %287 = vmatpush1.msra.mxu0 0.0
    %288 = vmatprep.subr.mxu0 0.0
    %289 = vmatpush1.msra.mxu0 0.0
    %290 = vmatprep.subr.mxu0 0.0
    %291 = vmatpush1.msra.mxu0 0.0
    %292 = vmatprep.subr.mxu0 0.0
    %293 = vmatpush1.msra.mxu0 0.0
    %294 = vmatprep.subr.mxu0 0.0
    %295 = vmatpush1.msra.mxu0 0.0
    %296 = vmatprep.subr.mxu0 0.0
    %297 = vmatpush1.msra.mxu0 0.0
    %298 = vmatprep.subr.mxu0 0.0
    %299 = vmatpush1.msra.mxu0 0.0
    %300 = vmatprep.subr.mxu0 0.0
    %301 = vmatpush1.msra.mxu0 0.0
    %302 = vmatprep.mubr.f32.mxu0 0.0
    %303 = vmatmul.mubr.f32.gmra.mrb[0].mxu0 %v212
    %v304 = vpop.f32.mrb[0].mxu0
    %v305 = vadd.f32 %v236, %v304
    %v306 = vpop.f32.mrb[0].mxu0
    %307 = vdwg.mxu0
    %308 = vmax.xlane.f32.xlu0 %v305
    %v309 = vpop.xlane.xlu0 %308
    %v310 = vsub.f32 %v305, %v309
    %v311 = vmul.f32 %v310, 1.442695
    %v312 = vpow.pop %v311
    %313 = vadd.xlane.f32.xlu0 %v312
    %v314 = vpop.xlane.xlu0 %313
    %v315 = vrcp.pop %v314
    %v316 = vmul.f32 %v314, %v315
    %v317 = vsub.f32 2.0, %v316
    %v318 = vmul.f32 %v315, %v317
    %s319 = sld [smem:[#allocation2]]
    %v320 = vstv %s319
    %v321 = vmul.f32 %v318, %v320
    %v322 = vmul.f32 %v312, %v321
    %323 = vst [vmem:[%s4] sm:$0xff] %v322
    // Predicated region
    $region22: #{quantum_policy_forward.1} parent=1 // pred_check
      _
    $region23: #{quantum_policy_forward.1} parent=1 // pred_check_branch
      %325 = sbr.rel (0) target = $region25
    $region24: #{quantum_policy_forward.1} parent=1 // pred_region
      _
    $region25: #{quantum_policy_forward.1} parent=1 // pred_fallthru
      _
    // Predicated region
    $region26: #{quantum_policy_forward.1} parent=1 // pred_check
      _
    $region27: #{quantum_policy_forward.1} parent=1 // pred_check_branch
      %327 = sbr.rel (0) target = $region29
    $region28: #{quantum_policy_forward.1} parent=1 // pred_region
      _
    $region29: #{quantum_policy_forward.1} parent=1 // pred_fallthru
      _
    %328 = vsyncpa [#allocation4], 1

</llo_original>
